<compile_context>
chip_gen: v7x
topology: tpu7x:2x2x1
jax: 0.10.0
libtpu: 0.0.40
codegen_flags: <defaults>
</compile_context>

<pallas_src>
import functools

import jax
import jax.numpy as jnp
from jax.experimental import pallas as pl
from jax.experimental.pallas import tpu as pltpu


def mlp_kernel(x_ref, w1_ref, b1_ref, w2_ref, b2_ref, w3_ref, b3_ref,
               w4_ref, b4_ref, o_ref):
    """Fused 4-layer MLP, batch-on-lanes orientation.

    x_ref : (block_b, D_in) bf16      (batch on sublanes only for the input tile)
    w*_ref: PyTorch (out, in) layout, bf16
    b*_ref: (out, 1) f32
    o_ref : (1, block_b) f32          (batch on lanes -> lane-dense stores)
    """
    x = x_ref[...]                                          # (bb, D_in) bf16

    # Layer 1 (NT form): contract D_in of w1 (64, D_in) with D_in of x (bb, D_in) -> (64, bb).
    h = jax.lax.dot_general(
        w1_ref[...], x,
        dimension_numbers=(((1,), (1,)), ((), ())),
        preferred_element_type=jnp.float32)
    h = jnp.maximum(h + b1_ref[...], 0.0)                   # f32 bias + ReLU

    # Layer 2: (32, 64) @ (64, bb) -> (32, bb)
    h = jnp.dot(w2_ref[...], h.astype(jnp.bfloat16), preferred_element_type=jnp.float32)
    h = jnp.maximum(h + b2_ref[...], 0.0)

    # Layer 3: (16, 32) @ (32, bb) -> (16, bb)
    h = jnp.dot(w3_ref[...], h.astype(jnp.bfloat16), preferred_element_type=jnp.float32)
    h = jnp.maximum(h + b3_ref[...], 0.0)

    # Layer 4: (1, 16) @ (16, bb) -> (1, bb), batch stays on lanes; lane-dense output store.
    out = jnp.dot(w4_ref[...], h.astype(jnp.bfloat16), preferred_element_type=jnp.float32)
    o_ref[...] = (out + b4_ref[...]).astype(o_ref.dtype)


def _round_up(n, m):
    return ((n + m - 1) // m) * m


def _per_row_vmem_bytes(d_in):
    """Approximate VMEM bytes per batch row, accounting for lane padding to 128."""
    d_pad = _round_up(max(d_in, 1), 128)
    x_bytes = 2 * d_pad * 2                    # bf16 x tile, double-buffered, lanes padded to 128
    out_bytes = 2 * 8 * 4                      # (1, bb) f32 out tile -> 8 sublanes, double-buffered
    act_f32 = (64 + 32 + 16 + 8) * 4           # live f32 activations (batch on lanes)
    act_bf16 = (64 + 32 + 16) * 2              # bf16 operand copies of the activations
    return x_bytes + out_bytes + act_f32 + act_bf16


def _choose_block_b(B, d_in):
    """Pick the batch tile: large (amortizes per-step overhead), 128-aligned, >=2 tiles if possible."""
    budget = 24 * 1024 * 1024                  # conservative: leaves headroom even on v7x (64 MiB VMEM)
    bb_max = max(budget // _per_row_vmem_bytes(d_in), 128)
    bb_max = min(bb_max, 16384)
    bb_max = (bb_max // 128) * 128
    if B <= 128:
        return 128                             # single minimal lane-dense tile
    # At least 2 tiles so dimension_semantics=("parallel",) can use both v7x TensorCores.
    n_tiles = max(2, pl.cdiv(B, bb_max))
    return _round_up(pl.cdiv(B, n_tiles), 128)


def _vmem_bytes_estimate(block_b, d_in, small_operands):
    """Padding-aware VMEM estimate: per-row terms + double-buffered resident weights/biases."""
    est = block_b * _per_row_vmem_bytes(d_in)
    for a in small_operands:
        r, c = a.shape
        sub = 16 if a.dtype.itemsize == 2 else 8
        est += 2 * _round_up(r, sub) * _round_up(c, 128) * a.dtype.itemsize
    return est


@functools.partial(jax.jit, static_argnames=("block_b",))
def neural_heuristic_forward(x, params, *, block_b=None):
    """x: (B, D_in) float. params: w1..w4 in PyTorch (out, in) layout, biases (out, 1)."""
    B, d_in = x.shape
    if block_b is None:
        block_b = _choose_block_b(B, d_in)

    # bf16 matmul operands (MXU-native everywhere); halves the kernel's HBM read of x.
    x = x.astype(jnp.bfloat16)

    n_tiles = pl.cdiv(B, block_b)
    B_pad = n_tiles * block_b
    if B_pad != B:
        x = jnp.pad(x, ((0, B_pad - B), (0, 0)))   # padded rows are sliced off after the kernel

    ws = tuple(params[f"w{i}"].astype(jnp.bfloat16) for i in (1, 2, 3, 4))
    bs = tuple(params[f"b{i}"].astype(jnp.float32) for i in (1, 2, 3, 4))
    operands = (ws[0], bs[0], ws[1], bs[1], ws[2], bs[2], ws[3], bs[3])

    est = _vmem_bytes_estimate(block_b, d_in, operands)
    vmem_limit = int(min(max(est * 3 // 2 + (8 << 20), 32 << 20), 48 << 20))

    # Weights/biases are small (all 2-D): keep full copies resident in VMEM for every batch tile.
    def full_spec(a):
        return pl.BlockSpec(a.shape, lambda i: (0, 0))

    out = pl.pallas_call(
        mlp_kernel,
        out_shape=jax.ShapeDtypeStruct((1, B_pad), jnp.float32),
        grid_spec=pltpu.PrefetchScalarGridSpec(
            num_scalar_prefetch=0,
            grid=(n_tiles,),
            in_specs=[pl.BlockSpec((block_b, d_in), lambda i: (i, 0))]   # x tile
                     + [full_spec(a) for a in operands],
            out_specs=pl.BlockSpec((1, block_b), lambda i: (0, i)),      # lane-dense output row
        ),
        compiler_params=pltpu.CompilerParams(
            dimension_semantics=("parallel",),    # shards batch tiles across TCs on v7x
            vmem_limit_bytes=vmem_limit,
        ),
    )(x, *operands)

    return out[0, :B].reshape(B, 1)


def init_params(key, input_size, hidden_sizes=(64, 32, 16)):
    """Deterministic init mimicking nn.Linear (U(-1/sqrt(fan_in), 1/sqrt(fan_in))), (out, in) layout."""
    sizes = [input_size] + list(hidden_sizes) + [1]
    params = {}
    for li, (fan_in, fan_out) in enumerate(zip(sizes[:-1], sizes[1:]), start=1):
        key, kw, kb = jax.random.split(key, 3)
        bound = 1.0 / (fan_in ** 0.5)
        params[f"w{li}"] = jax.random.uniform(kw, (fan_out, fan_in), jnp.float32, -bound, bound)
        params[f"b{li}"] = jax.random.uniform(kb, (fan_out, 1), jnp.float32, -bound, bound)
    return params


def reference_forward(x, params):
    h = x
    for li in (1, 2, 3):
        h = jnp.maximum(h @ params[f"w{li}"].T + params[f"b{li}"].T, 0.0)
    return h @ params["w4"].T + params["b4"].T


if __name__ == "__main__":
    key = jax.random.PRNGKey(0)
    B, INPUT_SIZE = 10, 32

    kx, kp, kx2, kx3 = jax.random.split(key, 4)
    x = jax.random.normal(kx, (B, INPUT_SIZE), jnp.float32)
    params = init_params(kp, INPUT_SIZE)

    # Small-batch path (single 128-wide lane-dense tile, batch remainder padded 10 -> 128).
    out = jax.block_until_ready(neural_heuristic_forward(x, params))
    ref = reference_forward(x, params)
    assert out.shape == (B, 1)
    assert jnp.allclose(out, ref, atol=5e-2, rtol=5e-2), float(jnp.max(jnp.abs(out - ref)))

    # Multi-tile path with remainder: 300 -> three lane-dense 128-wide output tiles.
    B2 = 300
    x2 = jax.random.normal(kx2, (B2, INPUT_SIZE), jnp.float32)
    out2 = jax.block_until_ready(neural_heuristic_forward(x2, params, block_b=128))
    ref2 = reference_forward(x2, params)
    assert out2.shape == (B2, 1)
    assert jnp.allclose(out2, ref2, atol=5e-2, rtol=5e-2), float(jnp.max(jnp.abs(out2 - ref2)))

    # Default tile sizing: splits into >=2 tiles so both v7x TensorCores get work.
    B3 = 4096
    x3 = jax.random.normal(kx3, (B3, INPUT_SIZE), jnp.float32)
    out3 = jax.block_until_ready(neural_heuristic_forward(x3, params))
    ref3 = reference_forward(x3, params)
    assert out3.shape == (B3, 1)
    assert jnp.allclose(out3, ref3, atol=5e-2, rtol=5e-2), float(jnp.max(jnp.abs(out3 - ref3)))

    print("KERNEL_OK")
</pallas_src>

<mosaic_0001>
module attributes {stable_mosaic.version = 11 : i64} {
  func.func @mlp_kernel(%arg0: i32, %arg1: memref<128x32xbf16, #tpu.memory_space<vmem>>, %arg2: memref<64x32xbf16, #tpu.memory_space<vmem>>, %arg3: memref<64x1xf32, #tpu.memory_space<vmem>>, %arg4: memref<32x64xbf16, #tpu.memory_space<vmem>>, %arg5: memref<32x1xf32, #tpu.memory_space<vmem>>, %arg6: memref<16x32xbf16, #tpu.memory_space<vmem>>, %arg7: memref<16x1xf32, #tpu.memory_space<vmem>>, %arg8: memref<1x16xbf16, #tpu.memory_space<vmem>>, %arg9: memref<1x1xf32, #tpu.memory_space<vmem>>, %arg10: memref<1x128xf32, #tpu.memory_space<vmem>>) attributes {dimension_semantics = [#tpu.dimension_semantics<parallel>], iteration_bounds = array<i64: 1>, scalar_prefetch = 0 : i64, scratch_operands = 0 : i64, tpu.core_type = #tpu.core_type<tc>, window_params = [{transform_indices = @transform_0, window_bounds = array<i64: 128, 32>}, {pipeline_mode = #tpu.pipeline_mode<synchronous>, transform_indices = @transform_1, window_bounds = array<i64: 64, 32>}, {pipeline_mode = #tpu.pipeline_mode<synchronous>, transform_indices = @transform_2, window_bounds = array<i64: 64, 1>}, {pipeline_mode = #tpu.pipeline_mode<synchronous>, transform_indices = @transform_3, window_bounds = array<i64: 32, 64>}, {pipeline_mode = #tpu.pipeline_mode<synchronous>, transform_indices = @transform_4, window_bounds = array<i64: 32, 1>}, {pipeline_mode = #tpu.pipeline_mode<synchronous>, transform_indices = @transform_5, window_bounds = array<i64: 16, 32>}, {pipeline_mode = #tpu.pipeline_mode<synchronous>, transform_indices = @transform_6, window_bounds = array<i64: 16, 1>}, {pipeline_mode = #tpu.pipeline_mode<synchronous>, transform_indices = @transform_7, window_bounds = array<i64: 1, 16>}, {pipeline_mode = #tpu.pipeline_mode<synchronous>, transform_indices = @transform_8, window_bounds = array<i64: 1, 1>}, {transform_indices = @transform_9, window_bounds = array<i64: 1, 128>}]} {
    %c0 = arith.constant 0 : index
    %c0_0 = arith.constant 0 : index
    %0 = vector.load %arg1[%c0, %c0_0] : memref<128x32xbf16, #tpu.memory_space<vmem>>, vector<128x32xbf16>
    %c0_1 = arith.constant 0 : index
    %c0_2 = arith.constant 0 : index
    %1 = vector.load %arg2[%c0_1, %c0_2] : memref<64x32xbf16, #tpu.memory_space<vmem>>, vector<64x32xbf16>
    %cst = arith.constant dense<0.000000e+00> : vector<64x128xf32>
    %2 = tpu.matmul %1, %0, %cst {dimension_numbers = #tpu.dot_dimension_numbers<[1], [1], [0], [0], [0, 0, 1, 0], [], []>} : vector<64x32xbf16>, vector<128x32xbf16>, vector<64x128xf32> -> vector<64x128xf32>
    %c0_3 = arith.constant 0 : index
    %c0_4 = arith.constant 0 : index
    %3 = vector.load %arg3[%c0_3, %c0_4] : memref<64x1xf32, #tpu.memory_space<vmem>>, vector<64x1xf32>
    %4 = vector.broadcast %3 : vector<64x1xf32> to vector<64x128xf32>
    %5 = arith.addf %2, %4 : vector<64x128xf32>
    %cst_5 = arith.constant 0.000000e+00 : f32
    %6 = vector.broadcast %cst_5 : f32 to vector<64x128xf32>
    %7 = arith.maximumf %5, %6 : vector<64x128xf32>
    %c0_6 = arith.constant 0 : index
    %c0_7 = arith.constant 0 : index
    %8 = vector.load %arg4[%c0_6, %c0_7] : memref<32x64xbf16, #tpu.memory_space<vmem>>, vector<32x64xbf16>
    %9 = arith.truncf %7 : vector<64x128xf32> to vector<64x128xbf16>
    %cst_8 = arith.constant dense<0.000000e+00> : vector<32x128xf32>
    %10 = tpu.matmul %8, %9, %cst_8 {dimension_numbers = #tpu.dot_dimension_numbers<[1], [0], [0], [1], [0, 0, 1, 1], [], []>} : vector<32x64xbf16>, vector<64x128xbf16>, vector<32x128xf32> -> vector<32x128xf32>
    %c0_9 = arith.constant 0 : index
    %c0_10 = arith.constant 0 : index
    %11 = vector.load %arg5[%c0_9, %c0_10] : memref<32x1xf32, #tpu.memory_space<vmem>>, vector<32x1xf32>
    %12 = vector.broadcast %11 : vector<32x1xf32> to vector<32x128xf32>
    %13 = arith.addf %10, %12 : vector<32x128xf32>
    %cst_11 = arith.constant 0.000000e+00 : f32
    %14 = vector.broadcast %cst_11 : f32 to vector<32x128xf32>
    %15 = arith.maximumf %13, %14 : vector<32x128xf32>
    %c0_12 = arith.constant 0 : index
    %c0_13 = arith.constant 0 : index
    %16 = vector.load %arg6[%c0_12, %c0_13] : memref<16x32xbf16, #tpu.memory_space<vmem>>, vector<16x32xbf16>
    %17 = arith.truncf %15 : vector<32x128xf32> to vector<32x128xbf16>
    %cst_14 = arith.constant dense<0.000000e+00> : vector<16x128xf32>
    %18 = tpu.matmul %16, %17, %cst_14 {dimension_numbers = #tpu.dot_dimension_numbers<[1], [0], [0], [1], [0, 0, 1, 1], [], []>} : vector<16x32xbf16>, vector<32x128xbf16>, vector<16x128xf32> -> vector<16x128xf32>
    %c0_15 = arith.constant 0 : index
    %c0_16 = arith.constant 0 : index
    %19 = vector.load %arg7[%c0_15, %c0_16] : memref<16x1xf32, #tpu.memory_space<vmem>>, vector<16x1xf32>
    %20 = vector.broadcast %19 : vector<16x1xf32> to vector<16x128xf32>
    %21 = arith.addf %18, %20 : vector<16x128xf32>
    %cst_17 = arith.constant 0.000000e+00 : f32
    %22 = vector.broadcast %cst_17 : f32 to vector<16x128xf32>
    %23 = arith.maximumf %21, %22 : vector<16x128xf32>
    %c0_18 = arith.constant 0 : index
    %c0_19 = arith.constant 0 : index
    %24 = vector.load %arg8[%c0_18, %c0_19] : memref<1x16xbf16, #tpu.memory_space<vmem>>, vector<1x16xbf16>
    %25 = arith.truncf %23 : vector<16x128xf32> to vector<16x128xbf16>
    %cst_20 = arith.constant dense<0.000000e+00> : vector<1x128xf32>
    %26 = tpu.matmul %24, %25, %cst_20 {dimension_numbers = #tpu.dot_dimension_numbers<[1], [0], [0], [1], [0, 0, 1, 1], [], []>} : vector<1x16xbf16>, vector<16x128xbf16>, vector<1x128xf32> -> vector<1x128xf32>
    %c0_21 = arith.constant 0 : index
    %c0_22 = arith.constant 0 : index
    %27 = vector.load %arg9[%c0_21, %c0_22] : memref<1x1xf32, #tpu.memory_space<vmem>>, vector<1x1xf32>
    %28 = vector.broadcast %27 : vector<1x1xf32> to vector<1x128xf32>
    %29 = arith.addf %26, %28 : vector<1x128xf32>
    %c0_23 = arith.constant 0 : index
    %c0_24 = arith.constant 0 : index
    %30 = vector.load %arg10[%c0_23, %c0_24] : memref<1x128xf32, #tpu.memory_space<vmem>>, vector<1x128xf32>
    tpu.vector_store %arg10[%c0_23, %c0_24], %29 {strides = array<i32>} : memref<1x128xf32, #tpu.memory_space<vmem>>, vector<1x128xf32>,
    return
  }
  func.func @transform_0(%arg0: i32) -> (i32, i32) {
    %c0_i32 = arith.constant 0 : i32
    %c0_i32_0 = arith.constant 0 : i32
    return %arg0, %c0_i32 : i32, i32
  }
  func.func @transform_1(%arg0: i32) -> (i32, i32) {
    %c0_i32 = arith.constant 0 : i32
    %c0_i32_0 = arith.constant 0 : i32
    %c0_i32_1 = arith.constant 0 : i32
    return %c0_i32, %c0_i32_0 : i32, i32
  }
  func.func @transform_2(%arg0: i32) -> (i32, i32) {
    %c0_i32 = arith.constant 0 : i32
    %c0_i32_0 = arith.constant 0 : i32
    %c0_i32_1 = arith.constant 0 : i32
    return %c0_i32, %c0_i32_0 : i32, i32
  }
  func.func @transform_3(%arg0: i32) -> (i32, i32) {
    %c0_i32 = arith.constant 0 : i32
    %c0_i32_0 = arith.constant 0 : i32
    %c0_i32_1 = arith.constant 0 : i32
    return %c0_i32, %c0_i32_0 : i32, i32
  }
  func.func @transform_4(%arg0: i32) -> (i32, i32) {
    %c0_i32 = arith.constant 0 : i32
    %c0_i32_0 = arith.constant 0 : i32
    %c0_i32_1 = arith.constant 0 : i32
    return %c0_i32, %c0_i32_0 : i32, i32
  }
  func.func @transform_5(%arg0: i32) -> (i32, i32) {
    %c0_i32 = arith.constant 0 : i32
    %c0_i32_0 = arith.constant 0 : i32
    %c0_i32_1 = arith.constant 0 : i32
    return %c0_i32, %c0_i32_0 : i32, i32
  }
  func.func @transform_6(%arg0: i32) -> (i32, i32) {
    %c0_i32 = arith.constant 0 : i32
    %c0_i32_0 = arith.constant 0 : i32
    %c0_i32_1 = arith.constant 0 : i32
    return %c0_i32, %c0_i32_0 : i32, i32
  }
  func.func @transform_7(%arg0: i32) -> (i32, i32) {
    %c0_i32 = arith.constant 0 : i32
    %c0_i32_0 = arith.constant 0 : i32
    %c0_i32_1 = arith.constant 0 : i32
    return %c0_i32, %c0_i32_0 : i32, i32
  }
  func.func @transform_8(%arg0: i32) -> (i32, i32) {
    %c0_i32 = arith.constant 0 : i32
    %c0_i32_0 = arith.constant 0 : i32
    %c0_i32_1 = arith.constant 0 : i32
    return %c0_i32, %c0_i32_0 : i32, i32
  }
  func.func @transform_9(%arg0: i32) -> (i32, i32) {
    %c0_i32 = arith.constant 0 : i32
    %c0_i32_0 = arith.constant 0 : i32
    return %c0_i32, %arg0 : i32, i32
  }
}

</mosaic_0001>

<llo_original>
// kernel: neural_heuristic_forward.1
$region0: #{neural_heuristic_forward.1}
  #allocation0 [shape = 'u32[]', space=smem, size = 0x4, offset = 0x4, fixed_abs, tag = 'smem constant byte address 0x4 - core index']
  #allocation1 [shape = 'u32[144,128]{1,0:T(1,128)}', space=vmem, size = 0x12000, scoped, tag = 'internal scratch']
  #allocation2 [shape = 'f32[1,1]{1,0:T(1,128)S(1)}', space=vmem, size = 0x200, scoped, tag = 'scoped memory for neural_heuristic_forward.1']
  %s0 = inlined_call_operand.vmem [shape: bf16[128,32], index: 0, kind: input, shape index: {}]
  %s1 = inlined_call_operand.vmem [shape: bf16[64,32], index: 1, kind: input, shape index: {}]
  %s2 = inlined_call_operand.vmem [shape: f32[64,1], index: 2, kind: input, shape index: {}]
  %s3 = inlined_call_operand.vmem [shape: bf16[32,64], index: 3, kind: input, shape index: {}]
  %s4 = inlined_call_operand.vmem [shape: f32[32,1], index: 4, kind: input, shape index: {}]
  %s5 = inlined_call_operand.vmem [shape: bf16[16,32], index: 5, kind: input, shape index: {}]
  %s6 = inlined_call_operand.vmem [shape: f32[16,1], index: 6, kind: input, shape index: {}]
  %s7 = inlined_call_operand.vmem [shape: bf16[1,16], index: 7, kind: input, shape index: {}]
  %s8 = inlined_call_operand.<no memory space> [shape: f32[1,1], index: 8, kind: input, shape index: {}]
  %s9 = inlined_call_operand.vmem [shape: f32[1,128], index: 9, kind: output, shape index: {}]
  %s10 = sld [smem:[#allocation0]]
  $region46: #{neural_heuristic_forward.1} parent=0
    _
  %s12 = ssub.s32 1, %s10
  %s13 = scalar_select 0, %s12, %s10
  %v14 = vstv %s8
  %15 = vst [vmem:[#allocation2] sm:$0x1] %v14
  // Predicated region
  $region2: #{neural_heuristic_forward.1} parent=0 // pred_check
    _
  $region3: #{neural_heuristic_forward.1} parent=0 // pred_check_branch
    %17 = sbr.rel (0) target = $region5
  $region4: #{neural_heuristic_forward.1} parent=0 // pred_region
    _
  $region5: #{neural_heuristic_forward.1} parent=0 // pred_fallthru
    _
  // Predicated region
  $region6: #{neural_heuristic_forward.1} parent=0 // pred_check
    _
  $region7: #{neural_heuristic_forward.1} parent=0 // pred_check_branch
    %19 = sbr.rel (0) target = $region9
  $region8: #{neural_heuristic_forward.1} parent=0 // pred_region
    _
  $region9: #{neural_heuristic_forward.1} parent=0 // pred_fallthru
    _
  // Predicated region
  $region10: #{neural_heuristic_forward.1} parent=0 // pred_check
    _
  $region11: #{neural_heuristic_forward.1} parent=0 // pred_check_branch
    %21 = sbr.rel (0) target = $region13
  $region12: #{neural_heuristic_forward.1} parent=0 // pred_region
    _
  $region13: #{neural_heuristic_forward.1} parent=0 // pred_fallthru
    _
  // Predicated region
  $region14: #{neural_heuristic_forward.1} parent=0 // pred_check
    _
  $region15: #{neural_heuristic_forward.1} parent=0 // pred_check_branch
    %23 = sbr.rel (0) target = $region17
  $region16: #{neural_heuristic_forward.1} parent=0 // pred_region
    _
  $region17: #{neural_heuristic_forward.1} parent=0 // pred_fallthru
    _
  // Predicated region
  $region18: #{neural_heuristic_forward.1} parent=0 // pred_check
    _
  $region19: #{neural_heuristic_forward.1} parent=0 // pred_check_branch
    %25 = sbr.rel (0) target = $region21
  $region20: #{neural_heuristic_forward.1} parent=0 // pred_region
    _
  $region21: #{neural_heuristic_forward.1} parent=0 // pred_fallthru
    _
  // Predicated region
  $region22: #{neural_heuristic_forward.1} parent=0 // pred_check
    _
  $region23: #{neural_heuristic_forward.1} parent=0 // pred_check_branch
    %27 = sbr.rel (0) target = $region25
  $region24: #{neural_heuristic_forward.1} parent=0 // pred_region
    _
  $region25: #{neural_heuristic_forward.1} parent=0 // pred_fallthru
    _
  // Predicated region
  $region26: #{neural_heuristic_forward.1} parent=0 // pred_check
    _
  $region27: #{neural_heuristic_forward.1} parent=0 // pred_check_branch
    %29 = sbr.rel (0) target = $region29
  $region28: #{neural_heuristic_forward.1} parent=0 // pred_region
    _
  $region29: #{neural_heuristic_forward.1} parent=0 // pred_fallthru
    _
  // Predicated region
  $region30: #{neural_heuristic_forward.1} parent=0 // pred_check
    _
  $region31: #{neural_heuristic_forward.1} parent=0 // pred_check_branch
    %31 = sbr.rel (0) target = $region33
  $region32: #{neural_heuristic_forward.1} parent=0 // pred_region
    _
  $region33: #{neural_heuristic_forward.1} parent=0 // pred_fallthru
    _
  // Predicated region
  $region34: #{neural_heuristic_forward.1} parent=0 // pred_check
    _
  $region35: #{neural_heuristic_forward.1} parent=0 // pred_check_branch
    %33 = sbr.rel (0) target = $region37
  $region36: #{neural_heuristic_forward.1} parent=0 // pred_region
    _
  $region37: #{neural_heuristic_forward.1} parent=0 // pred_fallthru
    _
  %v35 = vld [vmem:[%s0] sm:$0xf]
  %v36 = vld [vmem:[%s0 + $0x4] sm:$0xf]
  %v37 = vld [vmem:[%s0 + $0x8] sm:$0xf]
  %v38 = vld [vmem:[%s0 + $0xc] sm:$0xf]
  %v39 = vld [vmem:[%s0 + $0x10] sm:$0xf]
  %v40 = vld [vmem:[%s0 + $0x14] sm:$0xf]
  %v41 = vld [vmem:[%s0 + $0x18] sm:$0xf]
  %v42 = vld [vmem:[%s0 + $0x1c] sm:$0xf]
  %v43 = vld [vmem:[%s0 + $0x20] sm:$0xf]
  %v44 = vld [vmem:[%s0 + $0x24] sm:$0xf]
  %v45 = vld [vmem:[%s0 + $0x28] sm:$0xf]
  %v46 = vld [vmem:[%s0 + $0x2c] sm:$0xf]
  %v47 = vld [vmem:[%s0 + $0x30] sm:$0xf]
  %v48 = vld [vmem:[%s0 + $0x34] sm:$0xf]
  %v49 = vld [vmem:[%s0 + $0x38] sm:$0xf]
  %v50 = vld [vmem:[%s0 + $0x3c] sm:$0xf]
  %v51 = vld [vmem:[%s1] sm:$0xf]
  %v52 = vld [vmem:[%s1 + $0x4] sm:$0xf]
  %v53 = vld [vmem:[%s1 + $0x8] sm:$0xf]
  %v54 = vld [vmem:[%s1 + $0xc] sm:$0xf]
  %v55 = vld [vmem:[%s1 + $0x10] sm:$0xf]
  %v56 = vld [vmem:[%s1 + $0x14] sm:$0xf]
  %v57 = vld [vmem:[%s1 + $0x18] sm:$0xf]
  %v58 = vld [vmem:[%s1 + $0x1c] sm:$0xf]
  %v59 = vld [vmem:[%s2] sm:$0xff]
  %v60 = vld [vmem:[%s2 + $0x8] sm:$0xff]
  %v61 = vld [vmem:[%s2 + $0x10] sm:$0xff]
  %v62 = vld [vmem:[%s2 + $0x18] sm:$0xff]
  %v63 = vld [vmem:[%s2 + $0x20] sm:$0xff]
  %v64 = vld [vmem:[%s2 + $0x28] sm:$0xff]
  %v65 = vld [vmem:[%s2 + $0x30] sm:$0xff]
  %v66 = vld [vmem:[%s2 + $0x38] sm:$0xff]
  %68 = vset.pattern.permute.xlu0 0
  %69 = vperm.xlu0 %68, %v59
  %v70 = vpop.permute.xlu0 %69
  %73 = vset.pattern.permute.xlu0 0
  %74 = vperm.xlu0 %73, %v60
  %v75 = vpop.permute.xlu0 %74
  %78 = vset.pattern.permute.xlu0 0
  %79 = vperm.xlu0 %78, %v61
  %v80 = vpop.permute.xlu0 %79
  %83 = vset.pattern.permute.xlu0 0
  %84 = vperm.xlu0 %83, %v62
  %v85 = vpop.permute.xlu0 %84
  %88 = vset.pattern.permute.xlu0 0
  %89 = vperm.xlu0 %88, %v63
  %v90 = vpop.permute.xlu0 %89
  %93 = vset.pattern.permute.xlu0 0
  %94 = vperm.xlu0 %93, %v64
  %v95 = vpop.permute.xlu0 %94
  %98 = vset.pattern.permute.xlu0 0
  %99 = vperm.xlu0 %98, %v65
  %v100 = vpop.permute.xlu0 %99
  %103 = vset.pattern.permute.xlu0 0
  %104 = vperm.xlu0 %103, %v66
  %v105 = vpop.permute.xlu0 %104
  %v115 = vunpack.c.l.b16 %v51
  %v116 = vunpack.c.l.b16 %v52
  %v117 = vunpack.c.l.b16 %v53
  %v118 = vunpack.c.l.b16 %v54
  %v119 = vunpack.c.l.b16 %v55
  %v120 = vunpack.c.l.b16 %v56
  %v121 = vunpack.c.l.b16 %v57
  %v122 = vunpack.c.l.b16 %v58
  %v123 = vpack.c.b16 %v116, %v115
  %v124 = vpack.c.b16 %v118, %v117
  %v125 = vpack.c.b16 %v120, %v119
  %v126 = vpack.c.b16 %v122, %v121
  %v143 = vunpack.c.l.b16 %v35
  %v144 = vunpack.c.l.b16 %v36
  %v145 = vunpack.c.l.b16 %v37
  %v146 = vunpack.c.l.b16 %v38
  %v147 = vunpack.c.l.b16 %v39
  %v148 = vunpack.c.l.b16 %v40
  %v149 = vunpack.c.l.b16 %v41
  %v150 = vunpack.c.l.b16 %v42
  %v151 = vunpack.c.l.b16 %v43
  %v152 = vunpack.c.l.b16 %v44
  %v153 = vunpack.c.l.b16 %v45
  %v154 = vunpack.c.l.b16 %v46
  %v155 = vunpack.c.l.b16 %v47
  %v156 = vunpack.c.l.b16 %v48
  %v157 = vunpack.c.l.b16 %v49
  %v158 = vunpack.c.l.b16 %v50
  %v159 = vpack.c.b16 %v144, %v143
  %v160 = vpack.c.b16 %v146, %v145
  %v161 = vpack.c.b16 %v148, %v147
  %v162 = vpack.c.b16 %v150, %v149
  %v163 = vpack.c.b16 %v152, %v151
  %v164 = vpack.c.b16 %v154, %v153
  %v165 = vpack.c.b16 %v156, %v155
  %v166 = vpack.c.b16 %v158, %v157
  %vm167 = vcmask 261120
  %v169 = vsel %vm167, %v123, 0
  %v172 = vsel %vm167, %v124, 0
  %v175 = vsel %vm167, %v125, 0
  %v178 = vsel %vm167, %v126, 0
  %v181 = vsel %vm167, %v159, 0
  %v184 = vsel %vm167, %v160, 0
  %v187 = vsel %vm167, %v161, 0
  %v190 = vsel %vm167, %v162, 0
  %v193 = vsel %vm167, %v163, 0
  %v196 = vsel %vm167, %v164, 0
  %v199 = vsel %vm167, %v165, 0
  %v202 = vsel %vm167, %v166, 0
  %204 = vmatprep.subr.bf16.mxu0 0
  %205 = vmatpush1.bf16.xpose.msra.mxu0 %v181
  %206 = vmatprep.subr.bf16.mxu0 0
  %207 = vmatpush1.bf16.xpose.msra.mxu0 %v184
  %208 = vmatprep.subr.bf16.mxu0 0
  %209 = vmatpush1.bf16.xpose.msra.mxu0 %v187
  %210 = vmatprep.subr.bf16.mxu0 0
  %211 = vmatpush1.bf16.xpose.msra.mxu0 %v190
  %212 = vmatprep.subr.bf16.mxu0 0
  %213 = vmatpush1.bf16.xpose.msra.mxu0 %v193
  %214 = vmatprep.subr.bf16.mxu0 0
  %215 = vmatpush1.bf16.xpose.msra.mxu0 %v196
  %216 = vmatprep.subr.bf16.mxu0 0
  %217 = vmatpush1.bf16.xpose.msra.mxu0 %v199
  %218 = vmatprep.subr.bf16.mxu0 0
  %219 = vmatpush1.bf16.xpose.msra.mxu0 %v202
  %220 = vmatprep.subr.bf16.mxu0 0
  %221 = vmatpush1.bf16.xpose.msra.mxu0 0
  %222 = vmatprep.subr.bf16.mxu0 0
  %223 = vmatpush1.bf16.xpose.msra.mxu0 0
  %224 = vmatprep.subr.bf16.mxu0 0
  %225 = vmatpush1.bf16.xpose.msra.mxu0 0
  %226 = vmatprep.subr.bf16.mxu0 0
  %227 = vmatpush1.bf16.xpose.msra.mxu0 0
  %228 = vmatprep.subr.bf16.mxu0 0
  %229 = vmatpush1.bf16.xpose.msra.mxu0 0
  %230 = vmatprep.subr.bf16.mxu0 0
  %231 = vmatpush1.bf16.xpose.msra.mxu0 0
  %232 = vmatprep.subr.bf16.mxu0 0
  %233 = vmatpush1.bf16.xpose.msra.mxu0 0
  %234 = vmatprep.subr.bf16.mxu0 0
  %235 = vmatpush1.bf16.xpose.msra.mxu0 0
  %236 = vmatprep.mubr.bf16.mxu0 0
  %237 = vmatmul.mubr.bf16.gmra.mrb[0].mxu0 %v169
  %v238 = vpop.f32.mrb[0].mxu0
  %v239 = vadd.f32 %v70, %v238
  %v240 = vpop.f32.mrb[0].mxu0
  %v241 = vpop.f32.mrb[0].mxu0
  %v242 = vadd.f32 %v75, %v241
  %v243 = vpop.f32.mrb[0].mxu0
  %244 = vmatprep.mubr.bf16.mxu0 0
  %245 = vmatmul.mubr.bf16.gmra.mrb[0].mxu0 %v172
  %v246 = vpop.f32.mrb[0].mxu0
  %v247 = vadd.f32 %v80, %v246
  %v248 = vpop.f32.mrb[0].mxu0
  %v249 = vpop.f32.mrb[0].mxu0
  %v250 = vadd.f32 %v85, %v249
  %v251 = vpop.f32.mrb[0].mxu0
  %252 = vmatprep.mubr.bf16.mxu0 0
  %253 = vmatmul.mubr.bf16.gmra.mrb[0].mxu0 %v175
  %v254 = vpop.f32.mrb[0].mxu0
  %v255 = vadd.f32 %v90, %v254
  %v256 = vpop.f32.mrb[0].mxu0
  %v257 = vpop.f32.mrb[0].mxu0
  %v258 = vadd.f32 %v95, %v257
  %v259 = vpop.f32.mrb[0].mxu0
  %260 = vmatprep.mubr.bf16.mxu0 0
  %261 = vmatmul.mubr.bf16.gmra.mrb[0].mxu0 %v178
  %v262 = vpop.f32.mrb[0].mxu0
  %v263 = vadd.f32 %v100, %v262
  %v264 = vpop.f32.mrb[0].mxu0
  %v265 = vpop.f32.mrb[0].mxu0
  %v266 = vadd.f32 %v105, %v265
  %v267 = vpop.f32.mrb[0].mxu0
  %268 = vdwg.mxu0
  %v269 = vmax.f32 %v239, 0.0
  %v270 = vmax.f32 %v242, 0.0
  %v271 = vmax.f32 %v247, 0.0
  %v272 = vmax.f32 %v250, 0.0
  %v273 = vmax.f32 %v255, 0.0
  %v274 = vmax.f32 %v258, 0.0
  %v275 = vmax.f32 %v263, 0.0
  %v276 = vmax.f32 %v266, 0.0
  %v277 = vld [vmem:[%s3] sm:$0xf]
  %v278 = vld [vmem:[%s3 + $0x4] sm:$0xf]
  %v279 = vld [vmem:[%s3 + $0x8] sm:$0xf]
  %v280 = vld [vmem:[%s3 + $0xc] sm:$0xf]
  %v281 = vpack.c.bf16 %v270, %v269
  %v282 = vpack.c.bf16 %v272, %v271
  %v283 = vpack.c.bf16 %v274, %v273
  %v284 = vpack.c.bf16 %v276, %v275
  %v285 = vld [vmem:[%s4] sm:$0xff]
  %v286 = vld [vmem:[%s4 + $0x8] sm:$0xff]
  %v287 = vld [vmem:[%s4 + $0x10] sm:$0xff]
  %v288 = vld [vmem:[%s4 + $0x18] sm:$0xff]
  %290 = vset.pattern.permute.xlu0 0
  %291 = vperm.xlu0 %290, %v285
  %v292 = vpop.permute.xlu0 %291
  %295 = vset.pattern.permute.xlu0 0
  %296 = vperm.xlu0 %295, %v286
  %v297 = vpop.permute.xlu0 %296
  %300 = vset.pattern.permute.xlu0 0
  %301 = vperm.xlu0 %300, %v287
  %v302 = vpop.permute.xlu0 %301
  %305 = vset.pattern.permute.xlu0 0
  %306 = vperm.xlu0 %305, %v288
  %v307 = vpop.permute.xlu0 %306
  %v313 = vunpack.c.l.b16 %v277
  %v314 = vunpack.c.l.b16 %v278
  %v315 = vunpack.c.l.b16 %v279
  %v316 = vunpack.c.l.b16 %v280
  %v317 = vpack.c.b16 %v314, %v313
  %v318 = vpack.c.b16 %v316, %v315
  %vm319 = vcmask 523264
  %v321 = vsel %vm319, %v317, 0
  %v324 = vsel %vm319, %v318, 0
  %326 = vmatprep.subr.bf16.mxu0 0
  %327 = vmatpush1.bf16.msra.mxu0 %v281
  %328 = vmatprep.subr.bf16.mxu0 0
  %329 = vmatpush1.bf16.msra.mxu0 %v282
  %330 = vmatprep.subr.bf16.mxu0 0
  %331 = vmatpush1.bf16.msra.mxu0 %v283
  %332 = vmatprep.subr.bf16.mxu0 0
  %333 = vmatpush1.bf16.msra.mxu0 %v284
  %334 = vmatprep.subr.bf16.mxu0 0
  %335 = vmatpush1.bf16.msra.mxu0 0
  %336 = vmatprep.subr.bf16.mxu0 0
  %337 = vmatpush1.bf16.msra.mxu0 0
  %338 = vmatprep.subr.bf16.mxu0 0
  %339 = vmatpush1.bf16.msra.mxu0 0
  %340 = vmatprep.subr.bf16.mxu0 0
  %341 = vmatpush1.bf16.msra.mxu0 0
  %342 = vmatprep.subr.bf16.mxu0 0
  %343 = vmatpush1.bf16.msra.mxu0 0
  %344 = vmatprep.subr.bf16.mxu0 0
  %345 = vmatpush1.bf16.msra.mxu0 0
  %346 = vmatprep.subr.bf16.mxu0 0
  %347 = vmatpush1.bf16.msra.mxu0 0
  %348 = vmatprep.subr.bf16.mxu0 0
  %349 = vmatpush1.bf16.msra.mxu0 0
  %350 = vmatprep.subr.bf16.mxu0 0
  %351 = vmatpush1.bf16.msra.mxu0 0
  %352 = vmatprep.subr.bf16.mxu0 0
  %353 = vmatpush1.bf16.msra.mxu0 0
  %354 = vmatprep.subr.bf16.mxu0 0
  %355 = vmatpush1.bf16.msra.mxu0 0
  %356 = vmatprep.subr.bf16.mxu0 0
  %357 = vmatpush1.bf16.msra.mxu0 0
  %358 = vmatprep.mubr.bf16.mxu0 0
  %359 = vmatmul.mubr.bf16.gmra.mrb[0].mxu0 %v321
  %v360 = vpop.f32.mrb[0].mxu0
  %v361 = vadd.f32 %v292, %v360
  %v362 = vpop.f32.mrb[0].mxu0
  %v363 = vpop.f32.mrb[0].mxu0
  %v364 = vadd.f32 %v297, %v363
  %v365 = vpop.f32.mrb[0].mxu0
  %366 = vmatprep.mubr.bf16.mxu0 0
  %367 = vmatmul.mubr.bf16.gmra.mrb[0].mxu0 %v324
  %v368 = vpop.f32.mrb[0].mxu0
  %v369 = vadd.f32 %v302, %v368
  %v370 = vpop.f32.mrb[0].mxu0
  %v371 = vpop.f32.mrb[0].mxu0
  %v372 = vadd.f32 %v307, %v371
  %v373 = vpop.f32.mrb[0].mxu0
  %374 = vdwg.mxu0
  %v375 = vmax.f32 %v361, 0.0
  %v376 = vmax.f32 %v364, 0.0
  %v377 = vmax.f32 %v369, 0.0
  %v378 = vmax.f32 %v372, 0.0
  %v379 = vld [vmem:[%s5] sm:$0xf]
  %v380 = vld [vmem:[%s5 + $0x4] sm:$0xf]
  %v381 = vpack.c.bf16 %v376, %v375
  %v382 = vpack.c.bf16 %v378, %v377
  %v383 = vld [vmem:[%s6] sm:$0xff]
  %v384 = vld [vmem:[%s6 + $0x8] sm:$0xff]
  %386 = vset.pattern.permute.xlu0 0
  %387 = vperm.xlu0 %386, %v383
  %v388 = vpop.permute.xlu0 %387
  %391 = vset.pattern.permute.xlu0 0
  %392 = vperm.xlu0 %391, %v384
  %v393 = vpop.permute.xlu0 %392
  %v397 = vunpack.c.l.b16 %v379
  %v398 = vunpack.c.l.b16 %v380
  %v399 = vpack.c.b16 %v398, %v397
  %v401 = vsel %vm167, %v399, 0
  %403 = vmatprep.subr.bf16.mxu0 0
  %404 = vmatpush1.bf16.msra.mxu0 %v381
  %405 = vmatprep.subr.bf16.mxu0 0
  %406 = vmatpush1.bf16.msra.mxu0 %v382
  %407 = vmatprep.subr.bf16.mxu0 0
  %408 = vmatpush1.bf16.msra.mxu0 0
  %409 = vmatprep.subr.bf16.mxu0 0
  %410 = vmatpush1.bf16.msra.mxu0 0
  %411 = vmatprep.subr.bf16.mxu0 0
  %412 = vmatpush1.bf16.msra.mxu0 0
  %413 = vmatprep.subr.bf16.mxu0 0
  %414 = vmatpush1.bf16.msra.mxu0 0
  %415 = vmatprep.subr.bf16.mxu0 0
  %416 = vmatpush1.bf16.msra.mxu0 0
  %417 = vmatprep.subr.bf16.mxu0 0
  %418 = vmatpush1.bf16.msra.mxu0 0
  %419 = vmatprep.subr.bf16.mxu0 0
  %420 = vmatpush1.bf16.msra.mxu0 0
  %421 = vmatprep.subr.bf16.mxu0 0
  %422 = vmatpush1.bf16.msra.mxu0 0
  %423 = vmatprep.subr.bf16.mxu0 0
  %424 = vmatpush1.bf16.msra.mxu0 0
  %425 = vmatprep.subr.bf16.mxu0 0
  %426 = vmatpush1.bf16.msra.mxu0 0
  %427 = vmatprep.subr.bf16.mxu0 0
  %428 = vmatpush1.bf16.msra.mxu0 0
  %429 = vmatprep.subr.bf16.mxu0 0
  %430 = vmatpush1.bf16.msra.mxu0 0
  %431 = vmatprep.subr.bf16.mxu0 0
  %432 = vmatpush1.bf16.msra.mxu0 0
  %433 = vmatprep.subr.bf16.mxu0 0
  %434 = vmatpush1.bf16.msra.mxu0 0
  %435 = vmatprep.mubr.bf16.mxu0 0
  %436 = vmatmul.mubr.bf16.gmra.mrb[0].mxu0 %v401
  %v437 = vpop.f32.mrb[0].mxu0
  %v438 = vadd.f32 %v388, %v437
  %v439 = vpop.f32.mrb[0].mxu0
  %v440 = vpop.f32.mrb[0].mxu0
  %v441 = vadd.f32 %v393, %v440
  %v442 = vpop.f32.mrb[0].mxu0
  %443 = vdwg.mxu0
  %v444 = vmax.f32 %v438, 0.0
  %v445 = vmax.f32 %v441, 0.0
  %v446 = vld [vmem:[%s7] sm:$0x1]
  %v447 = vpack.c.bf16 %v445, %v444
  %v448 = vld [vmem:[#allocation2] sm:$0x1]
  %450 = vset.pattern.permute.xlu0 0
  %451 = vperm.xlu0 %450, %v448
  %v452 = vpop.permute.xlu0 %451
  %v454 = vlaneseq
  %v455 = vshrl.u32 %v454, 7
  %v456 = vsub.s32 0, %v455
  %v457 = vrot.slane %v452, %v456
  %vm458 = vcmask 130048
  %v460 = vsel %vm458, %v446, 0
  %462 = vmatprep.subr.bf16.mxu0 0
  %463 = vmatpush1.bf16.msra.mxu0 %v447
  %464 = vmatprep.subr.bf16.mxu0 0
  %465 = vmatpush1.bf16.msra.mxu0 0
  %466 = vmatprep.subr.bf16.mxu0 0
  %467 = vmatpush1.bf16.msra.mxu0 0
  %468 = vmatprep.subr.bf16.mxu0 0
  %469 = vmatpush1.bf16.msra.mxu0 0
  %470 = vmatprep.subr.bf16.mxu0 0
  %471 = vmatpush1.bf16.msra.mxu0 0
  %472 = vmatprep.subr.bf16.mxu0 0
  %473 = vmatpush1.bf16.msra.mxu0 0
  %474 = vmatprep.subr.bf16.mxu0 0
  %475 = vmatpush1.bf16.msra.mxu0 0
  %476 = vmatprep.subr.bf16.mxu0 0
  %477 = vmatpush1.bf16.msra.mxu0 0
  %478 = vmatprep.subr.bf16.mxu0 0
  %479 = vmatpush1.bf16.msra.mxu0 0
  %480 = vmatprep.subr.bf16.mxu0 0
  %481 = vmatpush1.bf16.msra.mxu0 0
  %482 = vmatprep.subr.bf16.mxu0 0
  %483 = vmatpush1.bf16.msra.mxu0 0
  %484 = vmatprep.subr.bf16.mxu0 0
  %485 = vmatpush1.bf16.msra.mxu0 0
  %486 = vmatprep.subr.bf16.mxu0 0
  %487 = vmatpush1.bf16.msra.mxu0 0
  %488 = vmatprep.subr.bf16.mxu0 0
  %489 = vmatpush1.bf16.msra.mxu0 0
  %490 = vmatprep.subr.bf16.mxu0 0
  %491 = vmatpush1.bf16.msra.mxu0 0
  %492 = vmatprep.subr.bf16.mxu0 0
  %493 = vmatpush1.bf16.msra.mxu0 0
  %494 = vmatprep.mubr.bf16.mxu0 0
  %495 = vmatmul.mubr.bf16.gmra.mrb[0].mxu0 %v460
  %v496 = vpop.f32.mrb[0].mxu0
  %v497 = vadd.f32 %v457, %v496
  %v498 = vpop.f32.mrb[0].mxu0
  %v499 = vpop.f32.mrb[0].mxu0
  %v500 = vpop.f32.mrb[0].mxu0
  %501 = vdwg.mxu0
  %502 = vst [vmem:[%s9] sm:$0x1] %v497
  // Predicated region
  $region38: #{neural_heuristic_forward.1} parent=0 // pred_check
    _
  $region39: #{neural_heuristic_forward.1} parent=0 // pred_check_branch
    %504 = sbr.rel (0) target = $region41
  $region40: #{neural_heuristic_forward.1} parent=0 // pred_region
    _
  $region41: #{neural_heuristic_forward.1} parent=0 // pred_fallthru
    _
  // Predicated region
  $region42: #{neural_heuristic_forward.1} parent=0 // pred_check
    _
  $region43: #{neural_heuristic_forward.1} parent=0 // pred_check_branch
    %506 = sbr.rel (0) target = $region45
  $region44: #{neural_heuristic_forward.1} parent=0 // pred_region
    _
  $region45: #{neural_heuristic_forward.1} parent=0 // pred_fallthru
    _

</llo_original>
